<compile_context>
chip_gen: v7x
topology: tpu7x:2x2x1
jax: 0.10.0
libtpu: 0.0.40
codegen_flags: <defaults>
</compile_context>

<pallas_src>
import functools

import jax
import jax.numpy as jnp
from jax.experimental import pallas as pl
from jax.experimental.pallas import tpu as pltpu

_HP = jax.lax.Precision.HIGHEST


def _round_up(x, m):
    return ((x + m - 1) // m) * m


def _activate(v, nonlin):
    if nonlin == "tanh":
        return jnp.tanh(v)
    elif nonlin == "relu":
        return jnp.maximum(v, 0.0)
    raise ValueError("unknown nonlinearity")


def rnn_recurrence_kernel(inp_ref, h0_ref, whh_ref, hid_ref, x_sc,
                          *, one_minus_alpha, nonlin, steps, unroll):
    """Serial recurrence over one chunk of `steps` time steps.

    inp_ref : (TT, Bblk, Np) f32       alpha * X[t] @ W_ih^T  (precomputed)
    h0_ref  : (Bblk, Np)     f32       initial x state for this batch block
    whh_ref : (Np, Np)       bf16/f32  alpha * W_hh^T (VMEM-resident)
    hid_ref : (TT, Bblk, Np) f32       r(t) output (lane-dense)
    x_sc    : (Bblk, Np)     f32       x state carried across time chunks
    """
    c = pl.program_id(1)            # time-chunk index (serial axis)

    @pl.when(c == 0)
    def _():
        x_sc[...] = h0_ref[...]

    whh = whh_ref[...]
    x0 = x_sc[...]
    r0 = _activate(x0, nonlin)      # r is always nonlin(x)

    def step(i, carry):
        x, r = carry
        # bf16 x bf16 MXU matmul with f32 accumulation; alpha already folded
        # into whh and into inp_ref, so the VALU chain is 1 vmul + 2 vadd.
        pre = jnp.dot(r.astype(whh.dtype), whh,
                      preferred_element_type=jnp.float32) + inp_ref[i]
        x_new = one_minus_alpha * x + pre
        r_new = _activate(x_new, nonlin)
        hid_ref[i] = r_new
        return (x_new, r_new)

    x_fin, _ = jax.lax.fori_loop(0, steps, step, (x0, r0), unroll=unroll)
    x_sc[...] = x_fin


def rnn_single_forward(X, perturb, hidden1, w_ih, w_hh, w_out, b_out,
                       *, alpha, nonlin="tanh", time_chunk=64,
                       matmul_dtype=jnp.bfloat16):
    T, B, n_in = X.shape
    N = w_hh.shape[0]
    n_out = w_out.shape[0]
    f32 = jnp.float32
    alpha = float(alpha)

    X = jnp.asarray(X, f32)
    perturb = jnp.asarray(perturb, f32)
    w_ih = jnp.asarray(w_ih, f32)
    w_hh = jnp.asarray(w_hh, f32)
    w_out = jnp.asarray(w_out, f32)
    b_out = jnp.asarray(b_out, f32)
    h0 = jnp.asarray(hidden1, f32).reshape(B, N)

    # Hoisted input projection; alpha folded into the (tiny) weight scale.
    inp_drive = jnp.einsum("tbi,ni->tbn", X, alpha * w_ih, precision=_HP)

    # Hidden dim padded to a lane multiple (zero padding is exact:
    # tanh(0)=relu(0)=0, zero weight rows/cols).  Small batches stay unpadded
    # in HBM; large batches split into two sublane-aligned blocks so v7x's
    # second TensorCore gets work via the "parallel" batch grid axis.
    Np = _round_up(max(N, 128), 128)
    if B >= 16:
        Bp = _round_up(B, 16)
        Bblk = Bp // 2
        nb = 2
    else:
        Bp = B
        Bblk = B
        nb = 1

    TT = min(time_chunk, T)
    n_chunks = -(-T // TT)
    Tp = n_chunks * TT

    needs_pad = (Tp, Bp, Np) != (T, B, N)
    if needs_pad:
        inp_p = jnp.zeros((Tp, Bp, Np), f32).at[:T, :B, :N].set(inp_drive)
    else:
        inp_p = inp_drive
    if (Bp, Np) != (B, N):
        h0_p = jnp.zeros((Bp, Np), f32).at[:B, :N].set(h0)
    else:
        h0_p = h0
    whh_p = (jnp.zeros((Np, Np), f32).at[:N, :N].set(alpha * w_hh.T)
             .astype(matmul_dtype))

    # Explicit VMEM budget: double-buffered in/out chunks + single-buffered
    # weight & h0 + x-state scratch, capped below the chip's physical VMEM.
    w_bytes = Np * Np * jnp.dtype(matmul_dtype).itemsize
    chunk_bytes = TT * Bblk * Np * 4
    vmem_needed = (2 * chunk_bytes      # input chunk (double-buffered)
                   + 2 * chunk_bytes    # output chunk (double-buffered)
                   + w_bytes            # alpha*W_hh^T (single buffer)
                   + Bblk * Np * 4      # h0 (single buffer)
                   + Bblk * Np * 4)     # x_sc scratch
    try:
        phys_vmem = pltpu.get_tpu_info().vmem_capacity_bytes
    except Exception:
        phys_vmem = 64 << 20            # conservative (v7x per-TC)
    cap = max(phys_vmem - (8 << 20), 32 << 20)
    vmem_limit = int(min(max(int(vmem_needed * 1.25) + (4 << 20), 32 << 20),
                         cap))

    kernel = functools.partial(
        rnn_recurrence_kernel,
        one_minus_alpha=1.0 - alpha, nonlin=nonlin, steps=TT,
        unroll=min(TT, 8))

    hid_p = pl.pallas_call(
        kernel,
        out_shape=jax.ShapeDtypeStruct((Tp, Bp, Np), f32),
        grid_spec=pltpu.PrefetchScalarGridSpec(
            num_scalar_prefetch=0,
            grid=(nb, n_chunks),
            in_specs=[
                # input drive chunk (default double-buffering hides HBM)
                pl.BlockSpec((TT, Bblk, Np), lambda b, c: (c, b, 0)),
                # initial state: only changes with batch block -> 1 buffer
                pl.BlockSpec((Bblk, Np), lambda b, c: (b, 0),
                             pipeline_mode=pl.Buffered(1)),
                # alpha*W_hh^T: constant index map, VMEM-resident -> 1 buffer
                pl.BlockSpec((Np, Np), lambda b, c: (0, 0),
                             pipeline_mode=pl.Buffered(1)),
            ],
            out_specs=pl.BlockSpec((TT, Bblk, Np), lambda b, c: (c, b, 0)),
            scratch_shapes=[pltpu.VMEM((Bblk, Np), f32)],   # x state carry
        ),
        compiler_params=pltpu.CompilerParams(
            dimension_semantics=("parallel", "arbitrary"),
            vmem_limit_bytes=vmem_limit),
    )(inp_p, h0_p, whh_p)

    hid = hid_p[:T, :B, :N] if needs_pad else hid_p            # (T, B, N)

    # Readout + perturbation hoisted out of the time loop (no serial dep).
    outv = jnp.einsum("tbn,on->tbo", hid, w_out, precision=_HP) + b_out
    outp = jnp.einsum("tbij,tbj->tbi", perturb, outv, precision=_HP)
    return outv, outp, hid


def rnn_single_reference(X, perturb, hidden1, w_ih, w_hh, w_out, b_out,
                         *, alpha, nonlin="tanh"):
    """Pure-JAX reference mirroring the PyTorch forward()."""
    act = jnp.tanh if nonlin == "tanh" else (lambda v: jnp.maximum(v, 0.0))
    T, B, _ = X.shape
    N = w_hh.shape[0]
    x = hidden1.reshape(B, N)
    r = act(x)

    def step(carry, inp):
        x, r = carry
        xin, P = inp
        x = x + alpha * (-x + jnp.dot(r, w_hh.T, precision=_HP)
                         + jnp.dot(xin, w_ih.T, precision=_HP))
        r = act(x)
        ov = jnp.dot(r, w_out.T, precision=_HP) + b_out
        op = jnp.einsum("bij,bj->bi", P, ov, precision=_HP)
        return (x, r), (ov, op, r)

    (_, _), (outv, outp, hid) = jax.lax.scan(step, (x, r), (X, perturb))
    return outv, outp, hid


if __name__ == "__main__":
    # Small shapes consistent with the module's forward().
    T, B, n_in, N, n_out = 8, 2, 4, 32, 4
    alpha = 0.1
    nonlin = "tanh"

    key = jax.random.PRNGKey(0)
    kX, kP, kH, k1, k2, k3, k4 = jax.random.split(key, 7)

    X = jax.random.normal(kX, (T, B, n_in), jnp.float32)
    perturb = jax.random.normal(kP, (T, B, n_out, n_out), jnp.float32)
    # init_hidden: (rand - 0.5) * 0.2, shape (1, B, N)
    hidden1 = (jax.random.uniform(kH, (1, B, N), jnp.float32) - 0.5) * 0.2

    # Deterministic parameters (shapes from nn.RNN / nn.Linear in __init__).
    w_ih = jax.random.normal(k1, (N, n_in), jnp.float32) / jnp.sqrt(n_in)
    w_hh = jax.random.normal(k2, (N, N), jnp.float32) / jnp.sqrt(N)
    w_out = jax.random.normal(k3, (n_out, N), jnp.float32) / jnp.sqrt(N)
    b_out = jax.random.normal(k4, (n_out,), jnp.float32) * 0.1
    # TODO(synk): noisy path (torch.randn noise injection) and the online
    # FORCE-training method are not part of forward() and are not implemented.

    outv_r, outp_r, hid_r = rnn_single_reference(
        X, perturb, hidden1, w_ih, w_hh, w_out, b_out,
        alpha=alpha, nonlin=nonlin)

    # Primary (performance) path: bf16 weights on the MXU, f32 state/accum.
    outv, outp, hid = rnn_single_forward(
        X, perturb, hidden1, w_ih, w_hh, w_out, b_out,
        alpha=alpha, nonlin=nonlin, matmul_dtype=jnp.bfloat16)
    jax.block_until_ready((outv, outp, hid))

    assert outv.shape == (T, B, n_out) and outp.shape == (T, B, n_out)
    assert hid.shape == (T, B, N)
    # bf16 weights accumulate rounding over T steps -> looser tolerance.
    assert jnp.allclose(outv, outv_r, atol=2e-2, rtol=2e-2)
    assert jnp.allclose(outp, outp_r, atol=2e-2, rtol=2e-2)
    assert jnp.allclose(hid, hid_r, atol=2e-2, rtol=2e-2)

    # f32-weight path (tight check); time_chunk=3 also exercises the
    # multi-chunk state carry and the padded time tail.
    outv_f, outp_f, hid_f = rnn_single_forward(
        X, perturb, hidden1, w_ih, w_hh, w_out, b_out,
        alpha=alpha, nonlin=nonlin, matmul_dtype=jnp.float32, time_chunk=3)
    jax.block_until_ready((outv_f, outp_f, hid_f))

    assert jnp.allclose(outv_f, outv_r, atol=1e-3, rtol=1e-3)
    assert jnp.allclose(outp_f, outp_r, atol=1e-3, rtol=1e-3)
    assert jnp.allclose(hid_f, hid_r, atol=1e-3, rtol=1e-3)

    print("KERNEL_OK")
</pallas_src>

<mosaic_0001>
module attributes {stable_mosaic.version = 11 : i64} {
  func.func @rnn_recurrence_kernel(%arg0: i32, %arg1: i32, %arg2: memref<8x2x128xf32, #tpu.memory_space<vmem>>, %arg3: memref<2x128xf32, #tpu.memory_space<vmem>>, %arg4: memref<128x128xbf16, #tpu.memory_space<vmem>>, %arg5: memref<8x2x128xf32, #tpu.memory_space<vmem>>, %arg6: memref<2x128xf32, #tpu.memory_space<vmem>>) attributes {dimension_semantics = [#tpu.dimension_semantics<parallel>, #tpu.dimension_semantics<arbitrary>], iteration_bounds = array<i64: 1, 1>, scalar_prefetch = 0 : i64, scratch_operands = 1 : i64, tpu.core_type = #tpu.core_type<tc>, window_params = [{transform_indices = @transform_0, window_bounds = array<i64: 8, 2, 128>}, {pipeline_mode = #tpu.pipeline_mode<synchronous>, transform_indices = @transform_1, window_bounds = array<i64: 2, 128>}, {pipeline_mode = #tpu.pipeline_mode<synchronous>, transform_indices = @transform_2, window_bounds = array<i64: 128, 128>}, {transform_indices = @transform_3, window_bounds = array<i64: 8, 2, 128>}]} {
    %c0_i32 = arith.constant 0 : i32
    %0 = arith.cmpi eq, %arg1, %c0_i32 : i32
    %1 = arith.extui %0 : i1 to i32
    %c0_i32_0 = arith.constant 0 : i32
    %2 = arith.cmpi ne, %1, %c0_i32_0 : i32
    scf.if %2 {
      %c0_54 = arith.constant 0 : index
      %c0_55 = arith.constant 0 : index
      %119 = vector.load %arg3[%c0_54, %c0_55] : memref<2x128xf32, #tpu.memory_space<vmem>>, vector<2x128xf32>
      %c0_56 = arith.constant 0 : index
      %c0_57 = arith.constant 0 : index
      %120 = vector.load %arg6[%c0_56, %c0_57] : memref<2x128xf32, #tpu.memory_space<vmem>>, vector<2x128xf32>
      tpu.vector_store %arg6[%c0_56, %c0_57], %119 {strides = array<i32>} : memref<2x128xf32, #tpu.memory_space<vmem>>, vector<2x128xf32>,
    } else {
    }
    %c0 = arith.constant 0 : index
    %c0_1 = arith.constant 0 : index
    %3 = vector.load %arg4[%c0, %c0_1] : memref<128x128xbf16, #tpu.memory_space<vmem>>, vector<128x128xbf16>
    %c0_2 = arith.constant 0 : index
    %c0_3 = arith.constant 0 : index
    %4 = vector.load %arg6[%c0_2, %c0_3] : memref<2x128xf32, #tpu.memory_space<vmem>>, vector<2x128xf32>
    %5 = math.tanh %4 : vector<2x128xf32>
    %c0_i32_4 = arith.constant 0 : i32
    %6 = arith.truncf %5 : vector<2x128xf32> to vector<2x128xbf16>
    %cst = arith.constant dense<0.000000e+00> : vector<2x128xf32>
    %7 = tpu.matmul %6, %3, %cst {dimension_numbers = #tpu.dot_dimension_numbers<[1], [0], [0], [1], [0, 0, 1, 1], [], []>} : vector<2x128xbf16>, vector<128x128xbf16>, vector<2x128xf32> -> vector<2x128xf32>
    %8 = arith.index_cast %c0_i32_4 : i32 to index
    %c0_5 = arith.constant 0 : index
    %c0_6 = arith.constant 0 : index
    %9 = vector.load %arg2[%8, %c0_5, %c0_6] : memref<8x2x128xf32, #tpu.memory_space<vmem>>, vector<1x2x128xf32>
    %10 = vector.shape_cast %9 : vector<1x2x128xf32> to vector<2x128xf32>
    %11 = arith.addf %7, %10 : vector<2x128xf32>
    %cst_7 = arith.constant 0.899999976 : f32
    %12 = vector.broadcast %cst_7 : f32 to vector<2x128xf32>
    %13 = arith.mulf %12, %4 : vector<2x128xf32>
    %14 = arith.addf %13, %11 : vector<2x128xf32>
    %15 = math.tanh %14 : vector<2x128xf32>
    %16 = arith.index_cast %c0_i32_4 : i32 to index
    %c0_8 = arith.constant 0 : index
    %c0_9 = arith.constant 0 : index
    %17 = vector.load %arg5[%16, %c0_8, %c0_9] : memref<8x2x128xf32, #tpu.memory_space<vmem>>, vector<1x2x128xf32>
    %18 = vector.shape_cast %17 : vector<1x2x128xf32> to vector<2x128xf32>
    %19 = vector.shape_cast %15 : vector<2x128xf32> to vector<1x2x128xf32>
    tpu.vector_store %arg5[%16, %c0_8, %c0_9], %19 {strides = array<i32>} : memref<8x2x128xf32, #tpu.memory_space<vmem>>, vector<1x2x128xf32>,
    %c1_i32 = arith.constant 1 : i32
    %20 = arith.truncf %15 : vector<2x128xf32> to vector<2x128xbf16>
    %cst_10 = arith.constant dense<0.000000e+00> : vector<2x128xf32>
    %21 = tpu.matmul %20, %3, %cst_10 {dimension_numbers = #tpu.dot_dimension_numbers<[1], [0], [0], [1], [0, 0, 1, 1], [], []>} : vector<2x128xbf16>, vector<128x128xbf16>, vector<2x128xf32> -> vector<2x128xf32>
    %22 = arith.index_cast %c1_i32 : i32 to index
    %c0_11 = arith.constant 0 : index
    %c0_12 = arith.constant 0 : index
    %23 = vector.load %arg2[%22, %c0_11, %c0_12] : memref<8x2x128xf32, #tpu.memory_space<vmem>>, vector<1x2x128xf32>
    %24 = vector.shape_cast %23 : vector<1x2x128xf32> to vector<2x128xf32>
    %25 = arith.addf %21, %24 : vector<2x128xf32>
    %cst_13 = arith.constant 0.899999976 : f32
    %26 = vector.broadcast %cst_13 : f32 to vector<2x128xf32>
    %27 = arith.mulf %26, %14 : vector<2x128xf32>
    %28 = arith.addf %27, %25 : vector<2x128xf32>
    %29 = math.tanh %28 : vector<2x128xf32>
    %30 = arith.index_cast %c1_i32 : i32 to index
    %c0_14 = arith.constant 0 : index
    %c0_15 = arith.constant 0 : index
    %31 = vector.load %arg5[%30, %c0_14, %c0_15] : memref<8x2x128xf32, #tpu.memory_space<vmem>>, vector<1x2x128xf32>
    %32 = vector.shape_cast %31 : vector<1x2x128xf32> to vector<2x128xf32>
    %33 = vector.shape_cast %29 : vector<2x128xf32> to vector<1x2x128xf32>
    tpu.vector_store %arg5[%30, %c0_14, %c0_15], %33 {strides = array<i32>} : memref<8x2x128xf32, #tpu.memory_space<vmem>>, vector<1x2x128xf32>,
    %c2_i32 = arith.constant 2 : i32
    %34 = arith.truncf %29 : vector<2x128xf32> to vector<2x128xbf16>
    %cst_16 = arith.constant dense<0.000000e+00> : vector<2x128xf32>
    %35 = tpu.matmul %34, %3, %cst_16 {dimension_numbers = #tpu.dot_dimension_numbers<[1], [0], [0], [1], [0, 0, 1, 1], [], []>} : vector<2x128xbf16>, vector<128x128xbf16>, vector<2x128xf32> -> vector<2x128xf32>
    %36 = arith.index_cast %c2_i32 : i32 to index
    %c0_17 = arith.constant 0 : index
    %c0_18 = arith.constant 0 : index
    %37 = vector.load %arg2[%36, %c0_17, %c0_18] : memref<8x2x128xf32, #tpu.memory_space<vmem>>, vector<1x2x128xf32>
    %38 = vector.shape_cast %37 : vector<1x2x128xf32> to vector<2x128xf32>
    %39 = arith.addf %35, %38 : vector<2x128xf32>
    %cst_19 = arith.constant 0.899999976 : f32
    %40 = vector.broadcast %cst_19 : f32 to vector<2x128xf32>
    %41 = arith.mulf %40, %28 : vector<2x128xf32>
    %42 = arith.addf %41, %39 : vector<2x128xf32>
    %43 = math.tanh %42 : vector<2x128xf32>
    %44 = arith.index_cast %c2_i32 : i32 to index
    %c0_20 = arith.constant 0 : index
    %c0_21 = arith.constant 0 : index
    %45 = vector.load %arg5[%44, %c0_20, %c0_21] : memref<8x2x128xf32, #tpu.memory_space<vmem>>, vector<1x2x128xf32>
    %46 = vector.shape_cast %45 : vector<1x2x128xf32> to vector<2x128xf32>
    %47 = vector.shape_cast %43 : vector<2x128xf32> to vector<1x2x128xf32>
    tpu.vector_store %arg5[%44, %c0_20, %c0_21], %47 {strides = array<i32>} : memref<8x2x128xf32, #tpu.memory_space<vmem>>, vector<1x2x128xf32>,
    %c3_i32 = arith.constant 3 : i32
    %48 = arith.truncf %43 : vector<2x128xf32> to vector<2x128xbf16>
    %cst_22 = arith.constant dense<0.000000e+00> : vector<2x128xf32>
    %49 = tpu.matmul %48, %3, %cst_22 {dimension_numbers = #tpu.dot_dimension_numbers<[1], [0], [0], [1], [0, 0, 1, 1], [], []>} : vector<2x128xbf16>, vector<128x128xbf16>, vector<2x128xf32> -> vector<2x128xf32>
    %50 = arith.index_cast %c3_i32 : i32 to index
    %c0_23 = arith.constant 0 : index
    %c0_24 = arith.constant 0 : index
    %51 = vector.load %arg2[%50, %c0_23, %c0_24] : memref<8x2x128xf32, #tpu.memory_space<vmem>>, vector<1x2x128xf32>
    %52 = vector.shape_cast %51 : vector<1x2x128xf32> to vector<2x128xf32>
    %53 = arith.addf %49, %52 : vector<2x128xf32>
    %cst_25 = arith.constant 0.899999976 : f32
    %54 = vector.broadcast %cst_25 : f32 to vector<2x128xf32>
    %55 = arith.mulf %54, %42 : vector<2x128xf32>
    %56 = arith.addf %55, %53 : vector<2x128xf32>
    %57 = math.tanh %56 : vector<2x128xf32>
    %58 = arith.index_cast %c3_i32 : i32 to index
    %c0_26 = arith.constant 0 : index
    %c0_27 = arith.constant 0 : index
    %59 = vector.load %arg5[%58, %c0_26, %c0_27] : memref<8x2x128xf32, #tpu.memory_space<vmem>>, vector<1x2x128xf32>
    %60 = vector.shape_cast %59 : vector<1x2x128xf32> to vector<2x128xf32>
    %61 = vector.shape_cast %57 : vector<2x128xf32> to vector<1x2x128xf32>
    tpu.vector_store %arg5[%58, %c0_26, %c0_27], %61 {strides = array<i32>} : memref<8x2x128xf32, #tpu.memory_space<vmem>>, vector<1x2x128xf32>,
    %c4_i32 = arith.constant 4 : i32
    %62 = arith.truncf %57 : vector<2x128xf32> to vector<2x128xbf16>
    %cst_28 = arith.constant dense<0.000000e+00> : vector<2x128xf32>
    %63 = tpu.matmul %62, %3, %cst_28 {dimension_numbers = #tpu.dot_dimension_numbers<[1], [0], [0], [1], [0, 0, 1, 1], [], []>} : vector<2x128xbf16>, vector<128x128xbf16>, vector<2x128xf32> -> vector<2x128xf32>
    %64 = arith.index_cast %c4_i32 : i32 to index
    %c0_29 = arith.constant 0 : index
    %c0_30 = arith.constant 0 : index
    %65 = vector.load %arg2[%64, %c0_29, %c0_30] : memref<8x2x128xf32, #tpu.memory_space<vmem>>, vector<1x2x128xf32>
    %66 = vector.shape_cast %65 : vector<1x2x128xf32> to vector<2x128xf32>
    %67 = arith.addf %63, %66 : vector<2x128xf32>
    %cst_31 = arith.constant 0.899999976 : f32
    %68 = vector.broadcast %cst_31 : f32 to vector<2x128xf32>
    %69 = arith.mulf %68, %56 : vector<2x128xf32>
    %70 = arith.addf %69, %67 : vector<2x128xf32>
    %71 = math.tanh %70 : vector<2x128xf32>
    %72 = arith.index_cast %c4_i32 : i32 to index
    %c0_32 = arith.constant 0 : index
    %c0_33 = arith.constant 0 : index
    %73 = vector.load %arg5[%72, %c0_32, %c0_33] : memref<8x2x128xf32, #tpu.memory_space<vmem>>, vector<1x2x128xf32>
    %74 = vector.shape_cast %73 : vector<1x2x128xf32> to vector<2x128xf32>
    %75 = vector.shape_cast %71 : vector<2x128xf32> to vector<1x2x128xf32>
    tpu.vector_store %arg5[%72, %c0_32, %c0_33], %75 {strides = array<i32>} : memref<8x2x128xf32, #tpu.memory_space<vmem>>, vector<1x2x128xf32>,
    %c5_i32 = arith.constant 5 : i32
    %76 = arith.truncf %71 : vector<2x128xf32> to vector<2x128xbf16>
    %cst_34 = arith.constant dense<0.000000e+00> : vector<2x128xf32>
    %77 = tpu.matmul %76, %3, %cst_34 {dimension_numbers = #tpu.dot_dimension_numbers<[1], [0], [0], [1], [0, 0, 1, 1], [], []>} : vector<2x128xbf16>, vector<128x128xbf16>, vector<2x128xf32> -> vector<2x128xf32>
    %78 = arith.index_cast %c5_i32 : i32 to index
    %c0_35 = arith.constant 0 : index
    %c0_36 = arith.constant 0 : index
    %79 = vector.load %arg2[%78, %c0_35, %c0_36] : memref<8x2x128xf32, #tpu.memory_space<vmem>>, vector<1x2x128xf32>
    %80 = vector.shape_cast %79 : vector<1x2x128xf32> to vector<2x128xf32>
    %81 = arith.addf %77, %80 : vector<2x128xf32>
    %cst_37 = arith.constant 0.899999976 : f32
    %82 = vector.broadcast %cst_37 : f32 to vector<2x128xf32>
    %83 = arith.mulf %82, %70 : vector<2x128xf32>
    %84 = arith.addf %83, %81 : vector<2x128xf32>
    %85 = math.tanh %84 : vector<2x128xf32>
    %86 = arith.index_cast %c5_i32 : i32 to index
    %c0_38 = arith.constant 0 : index
    %c0_39 = arith.constant 0 : index
    %87 = vector.load %arg5[%86, %c0_38, %c0_39] : memref<8x2x128xf32, #tpu.memory_space<vmem>>, vector<1x2x128xf32>
    %88 = vector.shape_cast %87 : vector<1x2x128xf32> to vector<2x128xf32>
    %89 = vector.shape_cast %85 : vector<2x128xf32> to vector<1x2x128xf32>
    tpu.vector_store %arg5[%86, %c0_38, %c0_39], %89 {strides = array<i32>} : memref<8x2x128xf32, #tpu.memory_space<vmem>>, vector<1x2x128xf32>,
    %c6_i32 = arith.constant 6 : i32
    %90 = arith.truncf %85 : vector<2x128xf32> to vector<2x128xbf16>
    %cst_40 = arith.constant dense<0.000000e+00> : vector<2x128xf32>
    %91 = tpu.matmul %90, %3, %cst_40 {dimension_numbers = #tpu.dot_dimension_numbers<[1], [0], [0], [1], [0, 0, 1, 1], [], []>} : vector<2x128xbf16>, vector<128x128xbf16>, vector<2x128xf32> -> vector<2x128xf32>
    %92 = arith.index_cast %c6_i32 : i32 to index
    %c0_41 = arith.constant 0 : index
    %c0_42 = arith.constant 0 : index
    %93 = vector.load %arg2[%92, %c0_41, %c0_42] : memref<8x2x128xf32, #tpu.memory_space<vmem>>, vector<1x2x128xf32>
    %94 = vector.shape_cast %93 : vector<1x2x128xf32> to vector<2x128xf32>
    %95 = arith.addf %91, %94 : vector<2x128xf32>
    %cst_43 = arith.constant 0.899999976 : f32
    %96 = vector.broadcast %cst_43 : f32 to vector<2x128xf32>
    %97 = arith.mulf %96, %84 : vector<2x128xf32>
    %98 = arith.addf %97, %95 : vector<2x128xf32>
    %99 = math.tanh %98 : vector<2x128xf32>
    %100 = arith.index_cast %c6_i32 : i32 to index
    %c0_44 = arith.constant 0 : index
    %c0_45 = arith.constant 0 : index
    %101 = vector.load %arg5[%100, %c0_44, %c0_45] : memref<8x2x128xf32, #tpu.memory_space<vmem>>, vector<1x2x128xf32>
    %102 = vector.shape_cast %101 : vector<1x2x128xf32> to vector<2x128xf32>
    %103 = vector.shape_cast %99 : vector<2x128xf32> to vector<1x2x128xf32>
    tpu.vector_store %arg5[%100, %c0_44, %c0_45], %103 {strides = array<i32>} : memref<8x2x128xf32, #tpu.memory_space<vmem>>, vector<1x2x128xf32>,
    %c7_i32 = arith.constant 7 : i32
    %104 = arith.truncf %99 : vector<2x128xf32> to vector<2x128xbf16>
    %cst_46 = arith.constant dense<0.000000e+00> : vector<2x128xf32>
    %105 = tpu.matmul %104, %3, %cst_46 {dimension_numbers = #tpu.dot_dimension_numbers<[1], [0], [0], [1], [0, 0, 1, 1], [], []>} : vector<2x128xbf16>, vector<128x128xbf16>, vector<2x128xf32> -> vector<2x128xf32>
    %106 = arith.index_cast %c7_i32 : i32 to index
    %c0_47 = arith.constant 0 : index
    %c0_48 = arith.constant 0 : index
    %107 = vector.load %arg2[%106, %c0_47, %c0_48] : memref<8x2x128xf32, #tpu.memory_space<vmem>>, vector<1x2x128xf32>
    %108 = vector.shape_cast %107 : vector<1x2x128xf32> to vector<2x128xf32>
    %109 = arith.addf %105, %108 : vector<2x128xf32>
    %cst_49 = arith.constant 0.899999976 : f32
    %110 = vector.broadcast %cst_49 : f32 to vector<2x128xf32>
    %111 = arith.mulf %110, %98 : vector<2x128xf32>
    %112 = arith.addf %111, %109 : vector<2x128xf32>
    %113 = math.tanh %112 : vector<2x128xf32>
    %114 = arith.index_cast %c7_i32 : i32 to index
    %c0_50 = arith.constant 0 : index
    %c0_51 = arith.constant 0 : index
    %115 = vector.load %arg5[%114, %c0_50, %c0_51] : memref<8x2x128xf32, #tpu.memory_space<vmem>>, vector<1x2x128xf32>
    %116 = vector.shape_cast %115 : vector<1x2x128xf32> to vector<2x128xf32>
    %117 = vector.shape_cast %113 : vector<2x128xf32> to vector<1x2x128xf32>
    tpu.vector_store %arg5[%114, %c0_50, %c0_51], %117 {strides = array<i32>} : memref<8x2x128xf32, #tpu.memory_space<vmem>>, vector<1x2x128xf32>,
    %c8_i32 = arith.constant 8 : i32
    %c0_52 = arith.constant 0 : index
    %c0_53 = arith.constant 0 : index
    %118 = vector.load %arg6[%c0_52, %c0_53] : memref<2x128xf32, #tpu.memory_space<vmem>>, vector<2x128xf32>
    tpu.vector_store %arg6[%c0_52, %c0_53], %112 {strides = array<i32>} : memref<2x128xf32, #tpu.memory_space<vmem>>, vector<2x128xf32>,
    return
  }
  func.func @transform_0(%arg0: i32, %arg1: i32) -> (i32, i32, i32) {
    %c0_i32 = arith.constant 0 : i32
    %c0_i32_0 = arith.constant 0 : i32
    return %arg1, %arg0, %c0_i32 : i32, i32, i32
  }
  func.func @transform_1(%arg0: i32, %arg1: i32) -> (i32, i32) {
    %c0_i32 = arith.constant 0 : i32
    %c0_i32_0 = arith.constant 0 : i32
    return %arg0, %c0_i32 : i32, i32
  }
  func.func @transform_2(%arg0: i32, %arg1: i32) -> (i32, i32) {
    %c0_i32 = arith.constant 0 : i32
    %c0_i32_0 = arith.constant 0 : i32
    %c0_i32_1 = arith.constant 0 : i32
    return %c0_i32, %c0_i32_0 : i32, i32
  }
  func.func @transform_3(%arg0: i32, %arg1: i32) -> (i32, i32, i32) {
    %c0_i32 = arith.constant 0 : i32
    %c0_i32_0 = arith.constant 0 : i32
    return %arg1, %arg0, %c0_i32 : i32, i32, i32
  }
}

</mosaic_0001>

<llo_original>
// kernel: tpu_custom_call.1
$region0: #{tpu_custom_call.1}
  #allocation0 [shape = 'u32[]', space=smem, size = 0x4, offset = 0x4, fixed_abs, tag = 'smem constant byte address 0x4 - core index']
  #allocation1 [shape = 'u32[144,128]{1,0:T(1,128)}', space=vmem, size = 0x12000, scoped, tag = 'internal scratch']
  #allocation2 [shape = 'f32[2,128]{1,0:T(2,128)}', space=vmem, size = 0x400, scoped, tag = 'scratch operand']
  %s0 = inlined_call_operand.hbm [shape: f32[8,2,128], index: 0, kind: input, shape index: {}]
  %s1 = inlined_call_operand.vmem [shape: f32[2,128], index: 1, kind: input, shape index: {}]
  %s2 = inlined_call_operand.hbm [shape: bf16[128,128], index: 2, kind: input, shape index: {}]
  %s3 = inlined_call_operand.hbm [shape: f32[8,2,128], index: 3, kind: output, shape index: {}]
  %s4 = sld [smem:[#allocation0]]
  $region34: #{tpu_custom_call.1} parent=0
    _
  %s6 = ssub.s32 1, %s4
  %s7 = scalar_select 0, %s6, %s4
  $region1: #{tpu_custom_call.1} parent=0
    #allocation3 [shape = 'u8[8192]{0}', space=vmem, size = 0x2000, scoped, tag = 'input window, operand 0, single buffered']
    #allocation4 [shape = 's32[1]{0}', space=sflag, size = 0x4, scoped, tag = 'scoped memory for tpu_custom_call.1']
    #allocation5 [shape = 's32[1]{0}', space=sflag, size = 0x4, scoped, tag = 'scoped memory for tpu_custom_call.1']
    #allocation6 [shape = 'u8[32768]{0}', space=vmem, size = 0x8000, scoped, tag = 'input window, operand 2, single buffered']
    #allocation7 [shape = 's32[1]{0}', space=sflag, size = 0x4, scoped, tag = 'scoped memory for tpu_custom_call.1']
    #allocation8 [shape = 'u8[8192]{0}', space=vmem, size = 0x2000, scoped, tag = 'output window, operand 0, single buffered']
    %8 = vsyncpa [#allocation4], 0
    %9 = vsyncpa [#allocation7], 0
    %10 = vsyncpa [#allocation5], 0
    // Predicated region
    $region2: #{tpu_custom_call.1} parent=1 // pred_check
      _
    $region3: #{tpu_custom_call.1} parent=1 // pred_check_branch
      %12 = sbr.rel (0) target = $region5
    $region4: #{tpu_custom_call.1} parent=1 // pred_region
      %s14 = ssub.s32 256, 256
      %15 = vsyncadd [#allocation4], %s14
      %s16 = sshll.u32 [#allocation3], 4
      %s17 = int_to_ptr.vmem [resolvable:$true] %s16
      %22 = dma.hbm_to_vmem [thread:$0]  %s0, 256, %s17, [#allocation4], 32, 32, 2
    $region5: #{tpu_custom_call.1} parent=1 // pred_fallthru
      _
    // Predicated region
    $region6: #{tpu_custom_call.1} parent=1 // pred_check
      _
    $region7: #{tpu_custom_call.1} parent=1 // pred_check_branch
      %24 = sbr.rel (0) target = $region9
    $region8: #{tpu_custom_call.1} parent=1 // pred_region
      _
    $region9: #{tpu_custom_call.1} parent=1 // pred_fallthru
      _
    // Predicated region
    $region10: #{tpu_custom_call.1} parent=1 // pred_check
      _
    $region11: #{tpu_custom_call.1} parent=1 // pred_check_branch
      %26 = sbr.rel (0) target = $region13
    $region12: #{tpu_custom_call.1} parent=1 // pred_region
      %s28 = ssub.s32 1024, 1024
      %29 = vsyncadd [#allocation7], %s28
      %s30 = sshll.u32 [#allocation6], 4
      %s31 = int_to_ptr.vmem [resolvable:$true] %s30
      %36 = dma.hbm_to_vmem [thread:$0]  %s2, 1024, %s31, [#allocation7], 64, 64, 4
    $region13: #{tpu_custom_call.1} parent=1 // pred_fallthru
      _
    // Predicated region
    $region14: #{tpu_custom_call.1} parent=1 // pred_check
      _
    $region15: #{tpu_custom_call.1} parent=1 // pred_check_branch
      %38 = sbr.rel (0) target = $region17
    $region16: #{tpu_custom_call.1} parent=1 // pred_region
      %39 = dma.done [#allocation4], 256
    $region17: #{tpu_custom_call.1} parent=1 // pred_fallthru
      _
    // Predicated region
    $region18: #{tpu_custom_call.1} parent=1 // pred_check
      _
    $region19: #{tpu_custom_call.1} parent=1 // pred_check_branch
      %41 = sbr.rel (0) target = $region21
    $region20: #{tpu_custom_call.1} parent=1 // pred_region
      %42 = dma.done [#allocation7], 1024
    $region21: #{tpu_custom_call.1} parent=1 // pred_fallthru
      _
    %p44 = scmp.eq.s32.totalorder 0, 0
    // Predicated region
    $region22: #{tpu_custom_call.1} parent=1 // pred_check
      %p45 = pneg %p44
    $region23: #{tpu_custom_call.1} parent=1 // pred_check_branch
      %47 = sbr.rel (%p45) target = $region25
    $region24: #{tpu_custom_call.1} parent=1 // pred_region
      %v48 = vld [vmem:[%s1] sm:$0x3]
      %49 = vst [vmem:[#allocation2] sm:$0x3] %v48
    $region25: #{tpu_custom_call.1} parent=1 // pred_fallthru
      _
    %v50 = vld [vmem:[#allocation6] sm:$0xf]
    %v51 = vld [vmem:[#allocation6 + $0x4] sm:$0xf]
    %v52 = vld [vmem:[#allocation6 + $0x8] sm:$0xf]
    %v53 = vld [vmem:[#allocation6 + $0xc] sm:$0xf]
    %v54 = vld [vmem:[#allocation6 + $0x10] sm:$0xf]
    %v55 = vld [vmem:[#allocation6 + $0x14] sm:$0xf]
    %v56 = vld [vmem:[#allocation6 + $0x18] sm:$0xf]
    %v57 = vld [vmem:[#allocation6 + $0x1c] sm:$0xf]
    %v58 = vld [vmem:[#allocation6 + $0x20] sm:$0xf]
    %v59 = vld [vmem:[#allocation6 + $0x24] sm:$0xf]
    %v60 = vld [vmem:[#allocation6 + $0x28] sm:$0xf]
    %v61 = vld [vmem:[#allocation6 + $0x2c] sm:$0xf]
    %v62 = vld [vmem:[#allocation6 + $0x30] sm:$0xf]
    %v63 = vld [vmem:[#allocation6 + $0x34] sm:$0xf]
    %v64 = vld [vmem:[#allocation6 + $0x38] sm:$0xf]
    %v65 = vld [vmem:[#allocation6 + $0x3c] sm:$0xf]
    %v66 = vld [vmem:[#allocation2] sm:$0x3]
    %v67 = vtanh.pop %v66
    %v68 = vpack.c.bf16 %v67, %v67
    %v69 = vld [vmem:[#allocation3] sm:$0x3]
    %v86 = vunpack.c.l.b16 %v50
    %v87 = vunpack.c.l.b16 %v51
    %v88 = vunpack.c.l.b16 %v52
    %v89 = vunpack.c.l.b16 %v53
    %v90 = vunpack.c.l.b16 %v54
    %v91 = vunpack.c.l.b16 %v55
    %v92 = vunpack.c.l.b16 %v56
    %v93 = vunpack.c.l.b16 %v57
    %v94 = vunpack.c.l.b16 %v58
    %v95 = vunpack.c.l.b16 %v59
    %v96 = vunpack.c.l.b16 %v60
    %v97 = vunpack.c.l.b16 %v61
    %v98 = vunpack.c.l.b16 %v62
    %v99 = vunpack.c.l.b16 %v63
    %v100 = vunpack.c.l.b16 %v64
    %v101 = vunpack.c.l.b16 %v65
    %v102 = vpack.c.b16 %v87, %v86
    %v103 = vpack.c.b16 %v89, %v88
    %v104 = vpack.c.b16 %v91, %v90
    %v105 = vpack.c.b16 %v93, %v92
    %v106 = vpack.c.b16 %v95, %v94
    %v107 = vpack.c.b16 %v97, %v96
    %v108 = vpack.c.b16 %v99, %v98
    %v109 = vpack.c.b16 %v101, %v100
    %118 = vmatprep.subr.bf16.mxu0 0
    %119 = vmatpush1.bf16.msra.mxu0 %v102
    %120 = vmatprep.subr.bf16.mxu0 0
    %121 = vmatpush1.bf16.msra.mxu0 %v103
    %122 = vmatprep.subr.bf16.mxu0 0
    %123 = vmatpush1.bf16.msra.mxu0 %v104
    %124 = vmatprep.subr.bf16.mxu0 0
    %125 = vmatpush1.bf16.msra.mxu0 %v105
    %126 = vmatprep.subr.bf16.mxu0 0
    %127 = vmatpush1.bf16.msra.mxu0 %v106
    %128 = vmatprep.subr.bf16.mxu0 0
    %129 = vmatpush1.bf16.msra.mxu0 %v107
    %130 = vmatprep.subr.bf16.mxu0 0
    %131 = vmatpush1.bf16.msra.mxu0 %v108
    %132 = vmatprep.subr.bf16.mxu0 0
    %133 = vmatpush1.bf16.msra.mxu0 %v109
    %134 = vmatprep.subr.bf16.mxu0 0
    %135 = vmatpush1.bf16.msra.mxu0 0
    %136 = vmatprep.subr.bf16.mxu0 0
    %137 = vmatpush1.bf16.msra.mxu0 0
    %138 = vmatprep.subr.bf16.mxu0 0
    %139 = vmatpush1.bf16.msra.mxu0 0
    %140 = vmatprep.subr.bf16.mxu0 0
    %141 = vmatpush1.bf16.msra.mxu0 0
    %142 = vmatprep.subr.bf16.mxu0 0
    %143 = vmatpush1.bf16.msra.mxu0 0
    %144 = vmatprep.subr.bf16.mxu0 0
    %145 = vmatpush1.bf16.msra.mxu0 0
    %146 = vmatprep.subr.bf16.mxu0 0
    %147 = vmatpush1.bf16.msra.mxu0 0
    %148 = vmatprep.subr.bf16.mxu0 0
    %149 = vmatpush1.bf16.msra.mxu0 0
    %150 = vmatprep.mubr.bf16.mxu0 0
    %151 = vmatmul.mubr.bf16.gmra.mrb[0].mxu0 %v68
    %v152 = vpop.f32.mrb[0].mxu0
    %v153 = vadd.f32 %v69, %v152
    %v154 = vpop.f32.mrb[0].mxu0
    %v155 = vpop.f32.mrb[0].mxu0
    %v156 = vpop.f32.mrb[0].mxu0
    %157 = vdwg.mxu0
    %v158 = vmul.f32 %v66, 0.9
    %v159 = vadd.f32 %v158, %v153
    %v160 = vtanh.pop %v159
    %161 = vst [vmem:[#allocation8] sm:$0x3] %v160
    %v162 = vpack.c.bf16 %v160, %v160
    %s163 = scalar_lea.vmem [#allocation3], 2
    %v164 = vld [vmem:[%s163] sm:$0x3]
    %165 = vmatprep.subr.bf16.mxu0 0
    %166 = vmatpush1.bf16.msra.mxu0 %v102
    %167 = vmatprep.subr.bf16.mxu0 0
    %168 = vmatpush1.bf16.msra.mxu0 %v103
    %169 = vmatprep.subr.bf16.mxu0 0
    %170 = vmatpush1.bf16.msra.mxu0 %v104
    %171 = vmatprep.subr.bf16.mxu0 0
    %172 = vmatpush1.bf16.msra.mxu0 %v105
    %173 = vmatprep.subr.bf16.mxu0 0
    %174 = vmatpush1.bf16.msra.mxu0 %v106
    %175 = vmatprep.subr.bf16.mxu0 0
    %176 = vmatpush1.bf16.msra.mxu0 %v107
    %177 = vmatprep.subr.bf16.mxu0 0
    %178 = vmatpush1.bf16.msra.mxu0 %v108
    %179 = vmatprep.subr.bf16.mxu0 0
    %180 = vmatpush1.bf16.msra.mxu0 %v109
    %181 = vmatprep.subr.bf16.mxu0 0
    %182 = vmatpush1.bf16.msra.mxu0 0
    %183 = vmatprep.subr.bf16.mxu0 0
    %184 = vmatpush1.bf16.msra.mxu0 0
    %185 = vmatprep.subr.bf16.mxu0 0
    %186 = vmatpush1.bf16.msra.mxu0 0
    %187 = vmatprep.subr.bf16.mxu0 0
    %188 = vmatpush1.bf16.msra.mxu0 0
    %189 = vmatprep.subr.bf16.mxu0 0
    %190 = vmatpush1.bf16.msra.mxu0 0
    %191 = vmatprep.subr.bf16.mxu0 0
    %192 = vmatpush1.bf16.msra.mxu0 0
    %193 = vmatprep.subr.bf16.mxu0 0
    %194 = vmatpush1.bf16.msra.mxu0 0
    %195 = vmatprep.subr.bf16.mxu0 0
    %196 = vmatpush1.bf16.msra.mxu0 0
    %197 = vmatprep.mubr.bf16.mxu0 0
    %198 = vmatmul.mubr.bf16.gmra.mrb[0].mxu0 %v162
    %v199 = vpop.f32.mrb[0].mxu0
    %v200 = vadd.f32 %v164, %v199
    %v201 = vpop.f32.mrb[0].mxu0
    %v202 = vpop.f32.mrb[0].mxu0
    %v203 = vpop.f32.mrb[0].mxu0
    %204 = vdwg.mxu0
    %v205 = vmul.f32 %v159, 0.9
    %v206 = vadd.f32 %v205, %v200
    %v207 = vtanh.pop %v206
    %s208 = scalar_lea.vmem [#allocation8], 2
    %209 = vst [vmem:[%s208] sm:$0x3] %v207
    %v210 = vpack.c.bf16 %v207, %v207
    %s211 = scalar_lea.vmem [#allocation3], 4
    %v212 = vld [vmem:[%s211] sm:$0x3]
    %213 = vmatprep.subr.bf16.mxu0 0
    %214 = vmatpush1.bf16.msra.mxu0 %v102
    %215 = vmatprep.subr.bf16.mxu0 0
    %216 = vmatpush1.bf16.msra.mxu0 %v103
    %217 = vmatprep.subr.bf16.mxu0 0
    %218 = vmatpush1.bf16.msra.mxu0 %v104
    %219 = vmatprep.subr.bf16.mxu0 0
    %220 = vmatpush1.bf16.msra.mxu0 %v105
    %221 = vmatprep.subr.bf16.mxu0 0
    %222 = vmatpush1.bf16.msra.mxu0 %v106
    %223 = vmatprep.subr.bf16.mxu0 0
    %224 = vmatpush1.bf16.msra.mxu0 %v107
    %225 = vmatprep.subr.bf16.mxu0 0
    %226 = vmatpush1.bf16.msra.mxu0 %v108
    %227 = vmatprep.subr.bf16.mxu0 0
    %228 = vmatpush1.bf16.msra.mxu0 %v109
    %229 = vmatprep.subr.bf16.mxu0 0
    %230 = vmatpush1.bf16.msra.mxu0 0
    %231 = vmatprep.subr.bf16.mxu0 0
    %232 = vmatpush1.bf16.msra.mxu0 0
    %233 = vmatprep.subr.bf16.mxu0 0
    %234 = vmatpush1.bf16.msra.mxu0 0
    %235 = vmatprep.subr.bf16.mxu0 0
    %236 = vmatpush1.bf16.msra.mxu0 0
    %237 = vmatprep.subr.bf16.mxu0 0
    %238 = vmatpush1.bf16.msra.mxu0 0
    %239 = vmatprep.subr.bf16.mxu0 0
    %240 = vmatpush1.bf16.msra.mxu0 0
    %241 = vmatprep.subr.bf16.mxu0 0
    %242 = vmatpush1.bf16.msra.mxu0 0
    %243 = vmatprep.subr.bf16.mxu0 0
    %244 = vmatpush1.bf16.msra.mxu0 0
    %245 = vmatprep.mubr.bf16.mxu0 0
    %246 = vmatmul.mubr.bf16.gmra.mrb[0].mxu0 %v210
    %v247 = vpop.f32.mrb[0].mxu0
    %v248 = vadd.f32 %v212, %v247
    %v249 = vpop.f32.mrb[0].mxu0
    %v250 = vpop.f32.mrb[0].mxu0
    %v251 = vpop.f32.mrb[0].mxu0
    %252 = vdwg.mxu0
    %v253 = vmul.f32 %v206, 0.9
    %v254 = vadd.f32 %v253, %v248
    %v255 = vtanh.pop %v254
    %s256 = scalar_lea.vmem [#allocation8], 4
    %257 = vst [vmem:[%s256] sm:$0x3] %v255
    %v258 = vpack.c.bf16 %v255, %v255
    %s259 = scalar_lea.vmem [#allocation3], 6
    %v260 = vld [vmem:[%s259] sm:$0x3]
    %261 = vmatprep.subr.bf16.mxu0 0
    %262 = vmatpush1.bf16.msra.mxu0 %v102
    %263 = vmatprep.subr.bf16.mxu0 0
    %264 = vmatpush1.bf16.msra.mxu0 %v103
    %265 = vmatprep.subr.bf16.mxu0 0
    %266 = vmatpush1.bf16.msra.mxu0 %v104
    %267 = vmatprep.subr.bf16.mxu0 0
    %268 = vmatpush1.bf16.msra.mxu0 %v105
    %269 = vmatprep.subr.bf16.mxu0 0
    %270 = vmatpush1.bf16.msra.mxu0 %v106
    %271 = vmatprep.subr.bf16.mxu0 0
    %272 = vmatpush1.bf16.msra.mxu0 %v107
    %273 = vmatprep.subr.bf16.mxu0 0
    %274 = vmatpush1.bf16.msra.mxu0 %v108
    %275 = vmatprep.subr.bf16.mxu0 0
    %276 = vmatpush1.bf16.msra.mxu0 %v109
    %277 = vmatprep.subr.bf16.mxu0 0
    %278 = vmatpush1.bf16.msra.mxu0 0
    %279 = vmatprep.subr.bf16.mxu0 0
    %280 = vmatpush1.bf16.msra.mxu0 0
    %281 = vmatprep.subr.bf16.mxu0 0
    %282 = vmatpush1.bf16.msra.mxu0 0
    %283 = vmatprep.subr.bf16.mxu0 0
    %284 = vmatpush1.bf16.msra.mxu0 0
    %285 = vmatprep.subr.bf16.mxu0 0
    %286 = vmatpush1.bf16.msra.mxu0 0
    %287 = vmatprep.subr.bf16.mxu0 0
    %288 = vmatpush1.bf16.msra.mxu0 0
    %289 = vmatprep.subr.bf16.mxu0 0
    %290 = vmatpush1.bf16.msra.mxu0 0
    %291 = vmatprep.subr.bf16.mxu0 0
    %292 = vmatpush1.bf16.msra.mxu0 0
    %293 = vmatprep.mubr.bf16.mxu0 0
    %294 = vmatmul.mubr.bf16.gmra.mrb[0].mxu0 %v258
    %v295 = vpop.f32.mrb[0].mxu0
    %v296 = vadd.f32 %v260, %v295
    %v297 = vpop.f32.mrb[0].mxu0
    %v298 = vpop.f32.mrb[0].mxu0
    %v299 = vpop.f32.mrb[0].mxu0
    %300 = vdwg.mxu0
    %v301 = vmul.f32 %v254, 0.9
    %v302 = vadd.f32 %v301, %v296
    %v303 = vtanh.pop %v302
    %s304 = scalar_lea.vmem [#allocation8], 6
    %305 = vst [vmem:[%s304] sm:$0x3] %v303
    %v306 = vpack.c.bf16 %v303, %v303
    %s307 = scalar_lea.vmem [#allocation3], 8
    %v308 = vld [vmem:[%s307] sm:$0x3]
    %309 = vmatprep.subr.bf16.mxu0 0
    %310 = vmatpush1.bf16.msra.mxu0 %v102
    %311 = vmatprep.subr.bf16.mxu0 0
    %312 = vmatpush1.bf16.msra.mxu0 %v103
    %313 = vmatprep.subr.bf16.mxu0 0
    %314 = vmatpush1.bf16.msra.mxu0 %v104
    %315 = vmatprep.subr.bf16.mxu0 0
    %316 = vmatpush1.bf16.msra.mxu0 %v105
    %317 = vmatprep.subr.bf16.mxu0 0
    %318 = vmatpush1.bf16.msra.mxu0 %v106
    %319 = vmatprep.subr.bf16.mxu0 0
    %320 = vmatpush1.bf16.msra.mxu0 %v107
    %321 = vmatprep.subr.bf16.mxu0 0
    %322 = vmatpush1.bf16.msra.mxu0 %v108
    %323 = vmatprep.subr.bf16.mxu0 0
    %324 = vmatpush1.bf16.msra.mxu0 %v109
    %325 = vmatprep.subr.bf16.mxu0 0
    %326 = vmatpush1.bf16.msra.mxu0 0
    %327 = vmatprep.subr.bf16.mxu0 0
    %328 = vmatpush1.bf16.msra.mxu0 0
    %329 = vmatprep.subr.bf16.mxu0 0
    %330 = vmatpush1.bf16.msra.mxu0 0
    %331 = vmatprep.subr.bf16.mxu0 0
    %332 = vmatpush1.bf16.msra.mxu0 0
    %333 = vmatprep.subr.bf16.mxu0 0
    %334 = vmatpush1.bf16.msra.mxu0 0
    %335 = vmatprep.subr.bf16.mxu0 0
    %336 = vmatpush1.bf16.msra.mxu0 0
    %337 = vmatprep.subr.bf16.mxu0 0
    %338 = vmatpush1.bf16.msra.mxu0 0
    %339 = vmatprep.subr.bf16.mxu0 0
    %340 = vmatpush1.bf16.msra.mxu0 0
    %341 = vmatprep.mubr.bf16.mxu0 0
    %342 = vmatmul.mubr.bf16.gmra.mrb[0].mxu0 %v306
    %v343 = vpop.f32.mrb[0].mxu0
    %v344 = vadd.f32 %v308, %v343
    %v345 = vpop.f32.mrb[0].mxu0
    %v346 = vpop.f32.mrb[0].mxu0
    %v347 = vpop.f32.mrb[0].mxu0
    %348 = vdwg.mxu0
    %v349 = vmul.f32 %v302, 0.9
    %v350 = vadd.f32 %v349, %v344
    %v351 = vtanh.pop %v350
    %s352 = scalar_lea.vmem [#allocation8], 8
    %353 = vst [vmem:[%s352] sm:$0x3] %v351
    %v354 = vpack.c.bf16 %v351, %v351
    %s355 = scalar_lea.vmem [#allocation3], 10
    %v356 = vld [vmem:[%s355] sm:$0x3]
    %357 = vmatprep.subr.bf16.mxu0 0
    %358 = vmatpush1.bf16.msra.mxu0 %v102
    %359 = vmatprep.subr.bf16.mxu0 0
    %360 = vmatpush1.bf16.msra.mxu0 %v103
    %361 = vmatprep.subr.bf16.mxu0 0
    %362 = vmatpush1.bf16.msra.mxu0 %v104
    %363 = vmatprep.subr.bf16.mxu0 0
    %364 = vmatpush1.bf16.msra.mxu0 %v105
    %365 = vmatprep.subr.bf16.mxu0 0
    %366 = vmatpush1.bf16.msra.mxu0 %v106
    %367 = vmatprep.subr.bf16.mxu0 0
    %368 = vmatpush1.bf16.msra.mxu0 %v107
    %369 = vmatprep.subr.bf16.mxu0 0
    %370 = vmatpush1.bf16.msra.mxu0 %v108
    %371 = vmatprep.subr.bf16.mxu0 0
    %372 = vmatpush1.bf16.msra.mxu0 %v109
    %373 = vmatprep.subr.bf16.mxu0 0
    %374 = vmatpush1.bf16.msra.mxu0 0
    %375 = vmatprep.subr.bf16.mxu0 0
    %376 = vmatpush1.bf16.msra.mxu0 0
    %377 = vmatprep.subr.bf16.mxu0 0
    %378 = vmatpush1.bf16.msra.mxu0 0
    %379 = vmatprep.subr.bf16.mxu0 0
    %380 = vmatpush1.bf16.msra.mxu0 0
    %381 = vmatprep.subr.bf16.mxu0 0
    %382 = vmatpush1.bf16.msra.mxu0 0
    %383 = vmatprep.subr.bf16.mxu0 0
    %384 = vmatpush1.bf16.msra.mxu0 0
    %385 = vmatprep.subr.bf16.mxu0 0
    %386 = vmatpush1.bf16.msra.mxu0 0
    %387 = vmatprep.subr.bf16.mxu0 0
    %388 = vmatpush1.bf16.msra.mxu0 0
    %389 = vmatprep.mubr.bf16.mxu0 0
    %390 = vmatmul.mubr.bf16.gmra.mrb[0].mxu0 %v354
    %v391 = vpop.f32.mrb[0].mxu0
    %v392 = vadd.f32 %v356, %v391
    %v393 = vpop.f32.mrb[0].mxu0
    %v394 = vpop.f32.mrb[0].mxu0
    %v395 = vpop.f32.mrb[0].mxu0
    %396 = vdwg.mxu0
    %v397 = vmul.f32 %v350, 0.9
    %v398 = vadd.f32 %v397, %v392
    %v399 = vtanh.pop %v398
    %s400 = scalar_lea.vmem [#allocation8], 10
    %401 = vst [vmem:[%s400] sm:$0x3] %v399
    %v402 = vpack.c.bf16 %v399, %v399
    %s403 = scalar_lea.vmem [#allocation3], 12
    %v404 = vld [vmem:[%s403] sm:$0x3]
    %405 = vmatprep.subr.bf16.mxu0 0
    %406 = vmatpush1.bf16.msra.mxu0 %v102
    %407 = vmatprep.subr.bf16.mxu0 0
    %408 = vmatpush1.bf16.msra.mxu0 %v103
    %409 = vmatprep.subr.bf16.mxu0 0
    %410 = vmatpush1.bf16.msra.mxu0 %v104
    %411 = vmatprep.subr.bf16.mxu0 0
    %412 = vmatpush1.bf16.msra.mxu0 %v105
    %413 = vmatprep.subr.bf16.mxu0 0
    %414 = vmatpush1.bf16.msra.mxu0 %v106
    %415 = vmatprep.subr.bf16.mxu0 0
    %416 = vmatpush1.bf16.msra.mxu0 %v107
    %417 = vmatprep.subr.bf16.mxu0 0
    %418 = vmatpush1.bf16.msra.mxu0 %v108
    %419 = vmatprep.subr.bf16.mxu0 0
    %420 = vmatpush1.bf16.msra.mxu0 %v109
    %421 = vmatprep.subr.bf16.mxu0 0
    %422 = vmatpush1.bf16.msra.mxu0 0
    %423 = vmatprep.subr.bf16.mxu0 0
    %424 = vmatpush1.bf16.msra.mxu0 0
    %425 = vmatprep.subr.bf16.mxu0 0
    %426 = vmatpush1.bf16.msra.mxu0 0
    %427 = vmatprep.subr.bf16.mxu0 0
    %428 = vmatpush1.bf16.msra.mxu0 0
    %429 = vmatprep.subr.bf16.mxu0 0
    %430 = vmatpush1.bf16.msra.mxu0 0
    %431 = vmatprep.subr.bf16.mxu0 0
    %432 = vmatpush1.bf16.msra.mxu0 0
    %433 = vmatprep.subr.bf16.mxu0 0
    %434 = vmatpush1.bf16.msra.mxu0 0
    %435 = vmatprep.subr.bf16.mxu0 0
    %436 = vmatpush1.bf16.msra.mxu0 0
    %437 = vmatprep.mubr.bf16.mxu0 0
    %438 = vmatmul.mubr.bf16.gmra.mrb[0].mxu0 %v402
    %v439 = vpop.f32.mrb[0].mxu0
    %v440 = vadd.f32 %v404, %v439
    %v441 = vpop.f32.mrb[0].mxu0
    %v442 = vpop.f32.mrb[0].mxu0
    %v443 = vpop.f32.mrb[0].mxu0
    %444 = vdwg.mxu0
    %v445 = vmul.f32 %v398, 0.9
    %v446 = vadd.f32 %v445, %v440
    %v447 = vtanh.pop %v446
    %s448 = scalar_lea.vmem [#allocation8], 12
    %449 = vst [vmem:[%s448] sm:$0x3] %v447
    %v450 = vpack.c.bf16 %v447, %v447
    %s451 = scalar_lea.vmem [#allocation3], 14
    %v452 = vld [vmem:[%s451] sm:$0x3]
    %453 = vmatprep.subr.bf16.mxu0 0
    %454 = vmatpush1.bf16.msra.mxu0 %v102
    %455 = vmatprep.subr.bf16.mxu0 0
    %456 = vmatpush1.bf16.msra.mxu0 %v103
    %457 = vmatprep.subr.bf16.mxu0 0
    %458 = vmatpush1.bf16.msra.mxu0 %v104
    %459 = vmatprep.subr.bf16.mxu0 0
    %460 = vmatpush1.bf16.msra.mxu0 %v105
    %461 = vmatprep.subr.bf16.mxu0 0
    %462 = vmatpush1.bf16.msra.mxu0 %v106
    %463 = vmatprep.subr.bf16.mxu0 0
    %464 = vmatpush1.bf16.msra.mxu0 %v107
    %465 = vmatprep.subr.bf16.mxu0 0
    %466 = vmatpush1.bf16.msra.mxu0 %v108
    %467 = vmatprep.subr.bf16.mxu0 0
    %468 = vmatpush1.bf16.msra.mxu0 %v109
    %469 = vmatprep.subr.bf16.mxu0 0
    %470 = vmatpush1.bf16.msra.mxu0 0
    %471 = vmatprep.subr.bf16.mxu0 0
    %472 = vmatpush1.bf16.msra.mxu0 0
    %473 = vmatprep.subr.bf16.mxu0 0
    %474 = vmatpush1.bf16.msra.mxu0 0
    %475 = vmatprep.subr.bf16.mxu0 0
    %476 = vmatpush1.bf16.msra.mxu0 0
    %477 = vmatprep.subr.bf16.mxu0 0
    %478 = vmatpush1.bf16.msra.mxu0 0
    %479 = vmatprep.subr.bf16.mxu0 0
    %480 = vmatpush1.bf16.msra.mxu0 0
    %481 = vmatprep.subr.bf16.mxu0 0
    %482 = vmatpush1.bf16.msra.mxu0 0
    %483 = vmatprep.subr.bf16.mxu0 0
    %484 = vmatpush1.bf16.msra.mxu0 0
    %485 = vmatprep.mubr.bf16.mxu0 0
    %486 = vmatmul.mubr.bf16.gmra.mrb[0].mxu0 %v450
    %v487 = vpop.f32.mrb[0].mxu0
    %v488 = vadd.f32 %v452, %v487
    %v489 = vpop.f32.mrb[0].mxu0
    %v490 = vpop.f32.mrb[0].mxu0
    %v491 = vpop.f32.mrb[0].mxu0
    %492 = vdwg.mxu0
    %v493 = vmul.f32 %v446, 0.9
    %v494 = vadd.f32 %v493, %v488
    %v495 = vtanh.pop %v494
    %s496 = scalar_lea.vmem [#allocation8], 14
    %497 = vst [vmem:[%s496] sm:$0x3] %v495
    %498 = vst [vmem:[#allocation2] sm:$0x3] %v494
    // Predicated region
    $region26: #{tpu_custom_call.1} parent=1 // pred_check
      _
    $region27: #{tpu_custom_call.1} parent=1 // pred_check_branch
      %500 = sbr.rel (0) target = $region29
    $region28: #{tpu_custom_call.1} parent=1 // pred_region
      %s502 = ssub.s32 256, 256
      %503 = vsyncadd [#allocation5], %s502
      %s504 = sshll.u32 [#allocation8], 4
      %s505 = int_to_ptr.vmem [resolvable:$true] %s504
      %510 = dma.vmem_to_hbm [thread:$0]  %s505, 256, %s3, [#allocation5], 32, 32, 2
    $region29: #{tpu_custom_call.1} parent=1 // pred_fallthru
      _
    // Predicated region
    $region30: #{tpu_custom_call.1} parent=1 // pred_check
      _
    $region31: #{tpu_custom_call.1} parent=1 // pred_check_branch
      %512 = sbr.rel (0) target = $region33
    $region32: #{tpu_custom_call.1} parent=1 // pred_region
      %513 = dma.done [#allocation5], 256
    $region33: #{tpu_custom_call.1} parent=1 // pred_fallthru
      _
    %514 = vsyncpa [#allocation4], 1
    %515 = vsyncpa [#allocation7], 1
    %516 = vsyncpa [#allocation5], 1

</llo_original>
